<compile_context>
chip_gen: v7x
topology: tpu7x:2x2x1
jax: 0.10.0
libtpu: 0.0.40
codegen_flags: <defaults>
</compile_context>

<pallas_src>
import functools

import jax
import jax.numpy as jnp
from jax.experimental import pallas as pl
from jax.experimental.pallas import tpu as pltpu

NCLS_PAD = 128  # lane-dense padded class dimension


def fused_conv_silu_gap_fc_kernel(patch_ref, wc_ref, bc_ref, wf_ref, bf_ref,
                                  o_ref):
    """Per-batch-tile fused: im2col conv + bias + SiLU -> GAP -> Linear.

    patch_ref: (B, H*W, K_pad)    im2col patches (VMEM, bf16)
    wc_ref:    (K_pad, Cout)      conv weights, K zero-padded (VMEM, bf16)
    bc_ref:    (1, Cout)          conv bias (VMEM, f32)
    wf_ref:    (Cout, NCLS_PAD)   fc weight, classes zero-padded (VMEM, bf16)
    bf_ref:    (1, NCLS_PAD)      fc bias, zero-padded (VMEM, f32)
    o_ref:     (B, 1, NCLS_PAD)   padded logits for this batch tile (VMEM, f32)
    """
    B, HW, Kp = patch_ref.shape
    Cout = wc_ref.shape[-1]
    TM = 64 if (HW % 64 == 0 and HW >= 64) else HW   # row-slab size
    n_slabs = HW // TM

    def slab(s, pooled):
        start = pl.multiple_of(s * TM, TM)
        p = patch_ref[:, pl.ds(start, TM), :].reshape(B * TM, Kp)     # bf16
        acc = jnp.dot(p, wc_ref[...], preferred_element_type=jnp.float32)
        acc = acc + bc_ref[...]
        acc = acc * jax.nn.sigmoid(acc)                               # SiLU, f32
        # per-image GAP partial sum for this slab
        return pooled + acc.reshape(B, TM, Cout).sum(axis=1)

    pooled = jax.lax.fori_loop(0, n_slabs, slab,
                               jnp.zeros((B, Cout), jnp.float32),
                               unroll=True)
    pooled = (pooled * (1.0 / HW)).astype(jnp.bfloat16)               # GAP mean

    logits = jnp.dot(pooled, wf_ref[...], preferred_element_type=jnp.float32)
    o_ref[:, 0, :] = logits + bf_ref[...]


def _pick_batch_block(n):
    """Largest divisor of n (<=8) that still leaves >=2 grid steps (megacore)."""
    best = 1
    for d in range(1, min(8, n) + 1):
        if n % d == 0 and n // d >= 2:
            best = d
    return best


@functools.partial(jax.jit, static_argnames=("n_class",))
def model_forward(x_nchw, params, n_class=5):
    """Forward pass. x_nchw: (N, Cin, H, W) f32. Returns (N, n_class) logits."""
    x = jnp.transpose(x_nchw, (0, 2, 3, 1)).astype(jnp.float32)   # NCHW->NHWC
    N, H, W, Cin = x.shape
    Cout = params["conv_w"].shape[-1]
    HW = H * W
    K = 9 * Cin
    k_pad = ((K + 31) // 32) * 32                                  # 27 -> 32

    # --- 'same' padding + im2col in the wrapper (fused XLA ops, not kernel
    # layout work). Tap ordering (kh, kw, cin) matches the weight reshape. ---
    xp = jnp.pad(x, ((0, 0), (1, 1), (1, 1), (0, 0)))
    cols = [xp[:, kh:kh + H, kw:kw + W, :] for kh in range(3) for kw in range(3)]
    patch = jnp.concatenate(cols, axis=-1).reshape(N, HW, K)
    patch = jnp.pad(patch, ((0, 0), (0, 0), (0, k_pad - K))).astype(jnp.bfloat16)

    # bf16 MXU operands (f32 accumulation in-kernel), K zero-padded to match.
    wc = jnp.pad(params["conv_w"].reshape(K, Cout),
                 ((0, k_pad - K), (0, 0))).astype(jnp.bfloat16)
    bc = params["conv_b"].reshape(1, Cout).astype(jnp.float32)
    # Lane-dense classifier: pad classes up to 128, slice back afterwards.
    wf = jnp.zeros((Cout, NCLS_PAD), jnp.bfloat16).at[:, :n_class].set(
        params["fc_w"].astype(jnp.bfloat16))
    bf = jnp.zeros((1, NCLS_PAD), jnp.float32).at[:, :n_class].set(
        params["fc_b"].reshape(1, n_class).astype(jnp.float32))

    b_block = _pick_batch_block(N)
    grid = (N // b_block,)

    logits_padded = pl.pallas_call(
        fused_conv_silu_gap_fc_kernel,
        out_shape=jax.ShapeDtypeStruct((N, 1, NCLS_PAD), jnp.float32),
        grid=grid,
        in_specs=[
            pl.BlockSpec((b_block, HW, k_pad), lambda n: (n, 0, 0)),
            pl.BlockSpec((k_pad, Cout), lambda n: (0, 0)),
            pl.BlockSpec((1, Cout), lambda n: (0, 0)),
            pl.BlockSpec((Cout, NCLS_PAD), lambda n: (0, 0)),
            pl.BlockSpec((1, NCLS_PAD), lambda n: (0, 0)),
        ],
        out_specs=pl.BlockSpec((b_block, 1, NCLS_PAD), lambda n: (n, 0, 0)),
        compiler_params=pltpu.CompilerParams(
            dimension_semantics=("parallel",),
            vmem_limit_bytes=32 * 1024 * 1024),
    )(patch, wc, bc, wf, bf)
    return logits_padded[:, 0, :n_class]


def reference_forward(x_nchw, params):
    """Pure-JAX reference with matched (bf16 conv-input) precision."""
    x = jnp.transpose(x_nchw, (0, 2, 3, 1)).astype(jnp.float32)
    N, H, W, _ = x.shape
    feats = jax.lax.conv_general_dilated(
        x.astype(jnp.bfloat16), params["conv_w"].astype(jnp.bfloat16),
        window_strides=(1, 1), padding="SAME",
        dimension_numbers=("NHWC", "HWIO", "NHWC"),
        preferred_element_type=jnp.float32)
    feats = feats + params["conv_b"].reshape(1, 1, 1, -1)
    feats = feats * jax.nn.sigmoid(feats)
    pooled = jnp.mean(feats.reshape(N, H * W, -1), axis=1)
    return pooled @ params["fc_w"] + params["fc_b"].reshape(1, -1)


def init_params(key, cin=3, n_features=128, n_class=5):
    k1, k2, k3, k4 = jax.random.split(key, 4)
    return {
        # stem conv (stand-in backbone feature extractor), lane-dense width
        "conv_w": 0.1 * jax.random.normal(k1, (3, 3, cin, n_features), jnp.float32),
        "conv_b": 0.1 * jax.random.normal(k2, (n_features,), jnp.float32),
        # classifier head: nn.Linear(n_features, n_class) stored as (in, out)
        "fc_w": 0.1 * jax.random.normal(k3, (n_features, n_class), jnp.float32),
        "fc_b": 0.1 * jax.random.normal(k4, (n_class,), jnp.float32),
    }


if __name__ == "__main__":
    key = jax.random.PRNGKey(0)
    kx, kp = jax.random.split(key)

    # Small shapes consistent with an image classifier: N=2, Cin=3, 16x16.
    x = jax.random.normal(kx, (2, 3, 16, 16), jnp.float32)
    params = init_params(kp, cin=3, n_features=128, n_class=5)

    logits = model_forward(x, params)
    jax.block_until_ready(logits)
    assert logits.shape == (2, 5)

    ref = reference_forward(x, params)
    assert jnp.allclose(logits, ref, atol=2e-2, rtol=2e-2), float(
        jnp.max(jnp.abs(logits - ref)))
    print("KERNEL_OK")
</pallas_src>

<mosaic_0001>
module attributes {stable_mosaic.version = 11 : i64} {
  func.func @fused_conv_silu_gap_fc_kernel(%arg0: i32, %arg1: memref<1x256x32xbf16, #tpu.memory_space<vmem>>, %arg2: memref<32x128xbf16, #tpu.memory_space<vmem>>, %arg3: memref<1x128xf32, #tpu.memory_space<vmem>>, %arg4: memref<128x128xbf16, #tpu.memory_space<vmem>>, %arg5: memref<1x128xf32, #tpu.memory_space<vmem>>, %arg6: memref<1x1x128xf32, #tpu.memory_space<vmem>>) attributes {dimension_semantics = [#tpu.dimension_semantics<parallel>], iteration_bounds = array<i64: 2>, scalar_prefetch = 0 : i64, scratch_operands = 0 : i64, tpu.core_type = #tpu.core_type<tc>, window_params = [{transform_indices = @transform_0, window_bounds = array<i64: 1, 256, 32>}, {pipeline_mode = #tpu.pipeline_mode<synchronous>, transform_indices = @transform_1, window_bounds = array<i64: 32, 128>}, {pipeline_mode = #tpu.pipeline_mode<synchronous>, transform_indices = @transform_2, window_bounds = array<i64: 1, 128>}, {pipeline_mode = #tpu.pipeline_mode<synchronous>, transform_indices = @transform_3, window_bounds = array<i64: 128, 128>}, {pipeline_mode = #tpu.pipeline_mode<synchronous>, transform_indices = @transform_4, window_bounds = array<i64: 1, 128>}, {transform_indices = @transform_5, window_bounds = array<i64: 1, 1, 128>}]} {
    %cst = arith.constant 0.000000e+00 : f32
    %0 = vector.broadcast %cst : f32 to vector<1x128xf32>
    %c0_i32 = arith.constant 0 : i32
    %c64_i32 = arith.constant 64 : i32
    %1 = arith.muli %c0_i32, %c64_i32 : i32
    %2 = tpu.assume_multiple %1, 64 : i32
    %c0 = arith.constant 0 : index
    %3 = arith.index_cast %2 : i32 to index
    %c0_0 = arith.constant 0 : index
    %4 = vector.load %arg1[%c0, %3, %c0_0] : memref<1x256x32xbf16, #tpu.memory_space<vmem>>, vector<1x64x32xbf16>
    %5 = vector.shape_cast %4 : vector<1x64x32xbf16> to vector<64x32xbf16>
    %c0_1 = arith.constant 0 : index
    %c0_2 = arith.constant 0 : index
    %6 = vector.load %arg2[%c0_1, %c0_2] : memref<32x128xbf16, #tpu.memory_space<vmem>>, vector<32x128xbf16>
    %cst_3 = arith.constant dense<0.000000e+00> : vector<64x128xf32>
    %7 = tpu.matmul %5, %6, %cst_3 {dimension_numbers = #tpu.dot_dimension_numbers<[1], [0], [0], [1], [0, 0, 1, 1], [], []>} : vector<64x32xbf16>, vector<32x128xbf16>, vector<64x128xf32> -> vector<64x128xf32>
    %c0_4 = arith.constant 0 : index
    %c0_5 = arith.constant 0 : index
    %8 = vector.load %arg3[%c0_4, %c0_5] : memref<1x128xf32, #tpu.memory_space<vmem>>, vector<1x128xf32>
    %9 = vector.broadcast %8 : vector<1x128xf32> to vector<64x128xf32>
    %10 = arith.addf %7, %9 : vector<64x128xf32>
    %11 = arith.negf %10 : vector<64x128xf32>
    %12 = math.exp %11 : vector<64x128xf32>
    %cst_6 = arith.constant 1.000000e+00 : f32
    %13 = vector.broadcast %cst_6 : f32 to vector<64x128xf32>
    %14 = arith.addf %13, %12 : vector<64x128xf32>
    %15 = arith.divf %13, %14 : vector<64x128xf32>
    %16 = arith.mulf %10, %15 : vector<64x128xf32>
    %17 = vector.shape_cast %16 : vector<64x128xf32> to vector<1x64x128xf32>
    %cst_7 = arith.constant dense<0.000000e+00> : vector<1x128xf32>
    %18 = vector.multi_reduction <add>, %17, %cst_7 [1] : vector<1x64x128xf32> to vector<1x128xf32>
    %19 = arith.addf %0, %18 : vector<1x128xf32>
    %c1_i32 = arith.constant 1 : i32
    %c64_i32_8 = arith.constant 64 : i32
    %20 = arith.muli %c1_i32, %c64_i32_8 : i32
    %21 = tpu.assume_multiple %20, 64 : i32
    %c0_9 = arith.constant 0 : index
    %22 = arith.index_cast %21 : i32 to index
    %c0_10 = arith.constant 0 : index
    %23 = vector.load %arg1[%c0_9, %22, %c0_10] : memref<1x256x32xbf16, #tpu.memory_space<vmem>>, vector<1x64x32xbf16>
    %24 = vector.shape_cast %23 : vector<1x64x32xbf16> to vector<64x32xbf16>
    %c0_11 = arith.constant 0 : index
    %c0_12 = arith.constant 0 : index
    %25 = vector.load %arg2[%c0_11, %c0_12] : memref<32x128xbf16, #tpu.memory_space<vmem>>, vector<32x128xbf16>
    %cst_13 = arith.constant dense<0.000000e+00> : vector<64x128xf32>
    %26 = tpu.matmul %24, %25, %cst_13 {dimension_numbers = #tpu.dot_dimension_numbers<[1], [0], [0], [1], [0, 0, 1, 1], [], []>} : vector<64x32xbf16>, vector<32x128xbf16>, vector<64x128xf32> -> vector<64x128xf32>
    %c0_14 = arith.constant 0 : index
    %c0_15 = arith.constant 0 : index
    %27 = vector.load %arg3[%c0_14, %c0_15] : memref<1x128xf32, #tpu.memory_space<vmem>>, vector<1x128xf32>
    %28 = vector.broadcast %27 : vector<1x128xf32> to vector<64x128xf32>
    %29 = arith.addf %26, %28 : vector<64x128xf32>
    %30 = arith.negf %29 : vector<64x128xf32>
    %31 = math.exp %30 : vector<64x128xf32>
    %cst_16 = arith.constant 1.000000e+00 : f32
    %32 = vector.broadcast %cst_16 : f32 to vector<64x128xf32>
    %33 = arith.addf %32, %31 : vector<64x128xf32>
    %34 = arith.divf %32, %33 : vector<64x128xf32>
    %35 = arith.mulf %29, %34 : vector<64x128xf32>
    %36 = vector.shape_cast %35 : vector<64x128xf32> to vector<1x64x128xf32>
    %cst_17 = arith.constant dense<0.000000e+00> : vector<1x128xf32>
    %37 = vector.multi_reduction <add>, %36, %cst_17 [1] : vector<1x64x128xf32> to vector<1x128xf32>
    %38 = arith.addf %19, %37 : vector<1x128xf32>
    %c2_i32 = arith.constant 2 : i32
    %c64_i32_18 = arith.constant 64 : i32
    %39 = arith.muli %c2_i32, %c64_i32_18 : i32
    %40 = tpu.assume_multiple %39, 64 : i32
    %c0_19 = arith.constant 0 : index
    %41 = arith.index_cast %40 : i32 to index
    %c0_20 = arith.constant 0 : index
    %42 = vector.load %arg1[%c0_19, %41, %c0_20] : memref<1x256x32xbf16, #tpu.memory_space<vmem>>, vector<1x64x32xbf16>
    %43 = vector.shape_cast %42 : vector<1x64x32xbf16> to vector<64x32xbf16>
    %c0_21 = arith.constant 0 : index
    %c0_22 = arith.constant 0 : index
    %44 = vector.load %arg2[%c0_21, %c0_22] : memref<32x128xbf16, #tpu.memory_space<vmem>>, vector<32x128xbf16>
    %cst_23 = arith.constant dense<0.000000e+00> : vector<64x128xf32>
    %45 = tpu.matmul %43, %44, %cst_23 {dimension_numbers = #tpu.dot_dimension_numbers<[1], [0], [0], [1], [0, 0, 1, 1], [], []>} : vector<64x32xbf16>, vector<32x128xbf16>, vector<64x128xf32> -> vector<64x128xf32>
    %c0_24 = arith.constant 0 : index
    %c0_25 = arith.constant 0 : index
    %46 = vector.load %arg3[%c0_24, %c0_25] : memref<1x128xf32, #tpu.memory_space<vmem>>, vector<1x128xf32>
    %47 = vector.broadcast %46 : vector<1x128xf32> to vector<64x128xf32>
    %48 = arith.addf %45, %47 : vector<64x128xf32>
    %49 = arith.negf %48 : vector<64x128xf32>
    %50 = math.exp %49 : vector<64x128xf32>
    %cst_26 = arith.constant 1.000000e+00 : f32
    %51 = vector.broadcast %cst_26 : f32 to vector<64x128xf32>
    %52 = arith.addf %51, %50 : vector<64x128xf32>
    %53 = arith.divf %51, %52 : vector<64x128xf32>
    %54 = arith.mulf %48, %53 : vector<64x128xf32>
    %55 = vector.shape_cast %54 : vector<64x128xf32> to vector<1x64x128xf32>
    %cst_27 = arith.constant dense<0.000000e+00> : vector<1x128xf32>
    %56 = vector.multi_reduction <add>, %55, %cst_27 [1] : vector<1x64x128xf32> to vector<1x128xf32>
    %57 = arith.addf %38, %56 : vector<1x128xf32>
    %c3_i32 = arith.constant 3 : i32
    %c64_i32_28 = arith.constant 64 : i32
    %58 = arith.muli %c3_i32, %c64_i32_28 : i32
    %59 = tpu.assume_multiple %58, 64 : i32
    %c0_29 = arith.constant 0 : index
    %60 = arith.index_cast %59 : i32 to index
    %c0_30 = arith.constant 0 : index
    %61 = vector.load %arg1[%c0_29, %60, %c0_30] : memref<1x256x32xbf16, #tpu.memory_space<vmem>>, vector<1x64x32xbf16>
    %62 = vector.shape_cast %61 : vector<1x64x32xbf16> to vector<64x32xbf16>
    %c0_31 = arith.constant 0 : index
    %c0_32 = arith.constant 0 : index
    %63 = vector.load %arg2[%c0_31, %c0_32] : memref<32x128xbf16, #tpu.memory_space<vmem>>, vector<32x128xbf16>
    %cst_33 = arith.constant dense<0.000000e+00> : vector<64x128xf32>
    %64 = tpu.matmul %62, %63, %cst_33 {dimension_numbers = #tpu.dot_dimension_numbers<[1], [0], [0], [1], [0, 0, 1, 1], [], []>} : vector<64x32xbf16>, vector<32x128xbf16>, vector<64x128xf32> -> vector<64x128xf32>
    %c0_34 = arith.constant 0 : index
    %c0_35 = arith.constant 0 : index
    %65 = vector.load %arg3[%c0_34, %c0_35] : memref<1x128xf32, #tpu.memory_space<vmem>>, vector<1x128xf32>
    %66 = vector.broadcast %65 : vector<1x128xf32> to vector<64x128xf32>
    %67 = arith.addf %64, %66 : vector<64x128xf32>
    %68 = arith.negf %67 : vector<64x128xf32>
    %69 = math.exp %68 : vector<64x128xf32>
    %cst_36 = arith.constant 1.000000e+00 : f32
    %70 = vector.broadcast %cst_36 : f32 to vector<64x128xf32>
    %71 = arith.addf %70, %69 : vector<64x128xf32>
    %72 = arith.divf %70, %71 : vector<64x128xf32>
    %73 = arith.mulf %67, %72 : vector<64x128xf32>
    %74 = vector.shape_cast %73 : vector<64x128xf32> to vector<1x64x128xf32>
    %cst_37 = arith.constant dense<0.000000e+00> : vector<1x128xf32>
    %75 = vector.multi_reduction <add>, %74, %cst_37 [1] : vector<1x64x128xf32> to vector<1x128xf32>
    %76 = arith.addf %57, %75 : vector<1x128xf32>
    %c4_i32 = arith.constant 4 : i32
    %cst_38 = arith.constant 3.906250e-03 : f32
    %77 = vector.broadcast %cst_38 : f32 to vector<1x128xf32>
    %78 = arith.mulf %76, %77 : vector<1x128xf32>
    %79 = arith.truncf %78 : vector<1x128xf32> to vector<1x128xbf16>
    %c0_39 = arith.constant 0 : index
    %c0_40 = arith.constant 0 : index
    %80 = vector.load %arg4[%c0_39, %c0_40] : memref<128x128xbf16, #tpu.memory_space<vmem>>, vector<128x128xbf16>
    %cst_41 = arith.constant dense<0.000000e+00> : vector<1x128xf32>
    %81 = tpu.matmul %79, %80, %cst_41 {dimension_numbers = #tpu.dot_dimension_numbers<[1], [0], [0], [1], [0, 0, 1, 1], [], []>} : vector<1x128xbf16>, vector<128x128xbf16>, vector<1x128xf32> -> vector<1x128xf32>
    %c0_42 = arith.constant 0 : index
    %c0_43 = arith.constant 0 : index
    %82 = vector.load %arg5[%c0_42, %c0_43] : memref<1x128xf32, #tpu.memory_space<vmem>>, vector<1x128xf32>
    %83 = arith.addf %81, %82 : vector<1x128xf32>
    %c0_44 = arith.constant 0 : index
    %c0_45 = arith.constant 0 : index
    %c0_46 = arith.constant 0 : index
    %84 = vector.load %arg6[%c0_44, %c0_45, %c0_46] : memref<1x1x128xf32, #tpu.memory_space<vmem>>, vector<1x1x128xf32>
    %85 = vector.shape_cast %84 : vector<1x1x128xf32> to vector<1x128xf32>
    %86 = vector.shape_cast %83 : vector<1x128xf32> to vector<1x1x128xf32>
    tpu.vector_store %arg6[%c0_44, %c0_45, %c0_46], %86 {strides = array<i32>} : memref<1x1x128xf32, #tpu.memory_space<vmem>>, vector<1x1x128xf32>,
    return
  }
  func.func @transform_0(%arg0: i32) -> (i32, i32, i32) {
    %c0_i32 = arith.constant 0 : i32
    %c0_i32_0 = arith.constant 0 : i32
    %c0_i32_1 = arith.constant 0 : i32
    return %arg0, %c0_i32, %c0_i32_0 : i32, i32, i32
  }
  func.func @transform_1(%arg0: i32) -> (i32, i32) {
    %c0_i32 = arith.constant 0 : i32
    %c0_i32_0 = arith.constant 0 : i32
    %c0_i32_1 = arith.constant 0 : i32
    return %c0_i32, %c0_i32_0 : i32, i32
  }
  func.func @transform_2(%arg0: i32) -> (i32, i32) {
    %c0_i32 = arith.constant 0 : i32
    %c0_i32_0 = arith.constant 0 : i32
    %c0_i32_1 = arith.constant 0 : i32
    return %c0_i32, %c0_i32_0 : i32, i32
  }
  func.func @transform_3(%arg0: i32) -> (i32, i32) {
    %c0_i32 = arith.constant 0 : i32
    %c0_i32_0 = arith.constant 0 : i32
    %c0_i32_1 = arith.constant 0 : i32
    return %c0_i32, %c0_i32_0 : i32, i32
  }
  func.func @transform_4(%arg0: i32) -> (i32, i32) {
    %c0_i32 = arith.constant 0 : i32
    %c0_i32_0 = arith.constant 0 : i32
    %c0_i32_1 = arith.constant 0 : i32
    return %c0_i32, %c0_i32_0 : i32, i32
  }
  func.func @transform_5(%arg0: i32) -> (i32, i32, i32) {
    %c0_i32 = arith.constant 0 : i32
    %c0_i32_0 = arith.constant 0 : i32
    %c0_i32_1 = arith.constant 0 : i32
    return %arg0, %c0_i32, %c0_i32_0 : i32, i32, i32
  }
}

</mosaic_0001>

<llo_original>
// kernel: model_forward.1
$region0: #{model_forward.1}
  #allocation0 [shape = 'u32[]', space=smem, size = 0x4, offset = 0x4, fixed_abs, tag = 'smem constant byte address 0x4 - core index']
  #allocation1 [shape = 'u32[144,128]{1,0:T(1,128)}', space=vmem, size = 0x12000, scoped, tag = 'internal scratch']
  %s0 = inlined_call_operand.vmem [shape: bf16[2,256,32], index: 0, kind: input, shape index: {}]
  %s1 = inlined_call_operand.vmem [shape: bf16[32,128], index: 1, kind: input, shape index: {}]
  %s2 = inlined_call_operand.vmem [shape: f32[1,128], index: 2, kind: input, shape index: {}]
  %s3 = inlined_call_operand.vmem [shape: bf16[128,128], index: 3, kind: input, shape index: {}]
  %s4 = inlined_call_operand.vmem [shape: f32[1,128], index: 4, kind: input, shape index: {}]
  %s5 = inlined_call_operand.hbm [shape: f32[2,1,128], index: 5, kind: output, shape index: {}]
  %s6 = sld [smem:[#allocation0]]
  $region53: #{model_forward.1} parent=0
    _
  %s8 = ssub.s32 1, %s6
  %s9 = scalar_select 0, %s8, %s6
  $region1: #{model_forward.1} parent=0
    #allocation2 [shape = 'u8[1024]{0}', space=vmem, size = 0x400, scoped, tag = 'output window, operand 0']
    #allocation3 [shape = 's32[2]{0}', space=sflag, size = 0x8, scoped, tag = 'scoped memory for model_forward.1']
    %10 = vsyncpa [#allocation3], 0
    %s11 = scalar_lea.sflag [#allocation3], 1
    %12 = vsyncpa %s11, 0
    loop: start=0, step=1, limit=4
    $region2: #{model_forward.1} parent=1 // loop_pre_header
      _
    $region3: #{model_forward.1} parent=1 // loop_header
      %s14 = sphi 0, %s18
      %p15 = scmp.ge.s32.totalorder %s14, 4
      %s24 = sphi 0, %s26
      %s27 = sphi 0, %s24
      %s28 = sphi 0, %s27
      %s44 = sphi 0, %s28
      %s48 = sphi 0, %s48
      %s50 = sphi 0, %s48
      %s51 = sphi 0, %s50
      %s65 = sphi 0, %s51
      %s69 = sphi 0, %s69
      %s71 = sphi 0, %s69
      %s72 = sphi 0, %s71
      %s86 = sphi 0, %s72
      %s90 = sphi 0, %s90
      %s92 = sphi 0, %s90
      %s93 = sphi 0, %s92
      %s107 = sphi 0, %s93
      %s111 = sphi 0, %s111
      %s113 = sphi 0, %s111
      %s114 = sphi 0, %s113
      %s128 = sphi 0, %s114
      %s134 = sphi 0, %s136
      %s137 = sphi 0, %s134
      %s138 = sphi 0, %s137
      %s154 = sphi 0, %s138
    $region4: #{model_forward.1} parent=1 // loop_header_branch
      %17 = sbr.rel (%p15) target = $region8
    $region5: #{model_forward.1} parent=1 // loop_body
      %s19 = ssub.s32 %s14, 1
      %s20 = ssub.s32 %s14, 2
      %s21 = sadd.s32 %s14, 1
      %s22 = ssub.s32 %s14, %s21
      %p23 = scmp.eq.s32.totalorder %s22, 0
      %s25 = sadd.s32 %s24, 1
      %s26 = scalar_select %p23, %s24, %s25
      %p29 = pneg %p23
      %p30 = scmp.eq.s32.totalorder %s14, 1
      %p31 = por %p29, %p30
      %p32 = scmp.ne.s32.totalorder %s24, %s27
      %p33 = scmp.eq.s32.totalorder %s14, 0
      %p34 = por %p32, %p33
      %p35 = scmp.ne.s32.totalorder %s24, %s27
      %p36 = scmp.eq.s32.totalorder %s19, 1
      %p37 = por %p35, %p36
      %p38 = scmp.ne.s32.totalorder %s27, %s28
      %p39 = scmp.eq.s32.totalorder %s19, 0
      %p40 = por %p38, %p39
      %p41 = scmp.ne.s32.totalorder %s27, %s28
      %p42 = scmp.eq.s32.totalorder %s20, 1
      %p43 = por %p41, %p42
      %p45 = scmp.ne.s32.totalorder %s28, %s44
      %p46 = scmp.eq.s32.totalorder %s20, 0
      %p47 = por %p45, %p46
      %s49 = sadd.s32 %s48, 1
      %p52 = scmp.eq.s32.totalorder %s14, 1
      %p53 = scmp.ne.s32.totalorder %s48, %s50
      %p54 = scmp.eq.s32.totalorder %s14, 0
      %p55 = por %p53, %p54
      %p56 = scmp.ne.s32.totalorder %s48, %s50
      %p57 = scmp.eq.s32.totalorder %s19, 1
      %p58 = por %p56, %p57
      %p59 = scmp.ne.s32.totalorder %s50, %s51
      %p60 = scmp.eq.s32.totalorder %s19, 0
      %p61 = por %p59, %p60
      %p62 = scmp.ne.s32.totalorder %s50, %s51
      %p63 = scmp.eq.s32.totalorder %s20, 1
      %p64 = por %p62, %p63
      %p66 = scmp.ne.s32.totalorder %s51, %s65
      %p67 = scmp.eq.s32.totalorder %s20, 0
      %p68 = por %p66, %p67
      %s70 = sadd.s32 %s69, 1
      %p73 = scmp.eq.s32.totalorder %s14, 1
      %p74 = scmp.ne.s32.totalorder %s69, %s71
      %p75 = scmp.eq.s32.totalorder %s14, 0
      %p76 = por %p74, %p75
      %p77 = scmp.ne.s32.totalorder %s69, %s71
      %p78 = scmp.eq.s32.totalorder %s19, 1
      %p79 = por %p77, %p78
      %p80 = scmp.ne.s32.totalorder %s71, %s72
      %p81 = scmp.eq.s32.totalorder %s19, 0
      %p82 = por %p80, %p81
      %p83 = scmp.ne.s32.totalorder %s71, %s72
      %p84 = scmp.eq.s32.totalorder %s20, 1
      %p85 = por %p83, %p84
      %p87 = scmp.ne.s32.totalorder %s72, %s86
      %p88 = scmp.eq.s32.totalorder %s20, 0
      %p89 = por %p87, %p88
      %s91 = sadd.s32 %s90, 1
      %p94 = scmp.eq.s32.totalorder %s14, 1
      %p95 = scmp.ne.s32.totalorder %s90, %s92
      %p96 = scmp.eq.s32.totalorder %s14, 0
      %p97 = por %p95, %p96
      %p98 = scmp.ne.s32.totalorder %s90, %s92
      %p99 = scmp.eq.s32.totalorder %s19, 1
      %p100 = por %p98, %p99
      %p101 = scmp.ne.s32.totalorder %s92, %s93
      %p102 = scmp.eq.s32.totalorder %s19, 0
      %p103 = por %p101, %p102
      %p104 = scmp.ne.s32.totalorder %s92, %s93
      %p105 = scmp.eq.s32.totalorder %s20, 1
      %p106 = por %p104, %p105
      %p108 = scmp.ne.s32.totalorder %s93, %s107
      %p109 = scmp.eq.s32.totalorder %s20, 0
      %p110 = por %p108, %p109
      %s112 = sadd.s32 %s111, 1
      %p115 = scmp.eq.s32.totalorder %s14, 1
      %p116 = scmp.ne.s32.totalorder %s111, %s113
      %p117 = scmp.eq.s32.totalorder %s14, 0
      %p118 = por %p116, %p117
      %p119 = scmp.ne.s32.totalorder %s111, %s113
      %p120 = scmp.eq.s32.totalorder %s19, 1
      %p121 = por %p119, %p120
      %p122 = scmp.ne.s32.totalorder %s113, %s114
      %p123 = scmp.eq.s32.totalorder %s19, 0
      %p124 = por %p122, %p123
      %p125 = scmp.ne.s32.totalorder %s113, %s114
      %p126 = scmp.eq.s32.totalorder %s20, 1
      %p127 = por %p125, %p126
      %p129 = scmp.ne.s32.totalorder %s114, %s128
      %p130 = scmp.eq.s32.totalorder %s20, 0
      %p131 = por %p129, %p130
      %s132 = ssub.s32 %s14, %s21
      %p133 = scmp.eq.s32.totalorder %s132, 0
      %s135 = sadd.s32 %s134, 1
      %s136 = scalar_select %p133, %s134, %s135
      %p139 = pneg %p133
      %p140 = scmp.eq.s32.totalorder %s14, 1
      %p141 = por %p139, %p140
      %p142 = scmp.ne.s32.totalorder %s134, %s137
      %p143 = scmp.eq.s32.totalorder %s14, 0
      %p144 = por %p142, %p143
      %p145 = scmp.ne.s32.totalorder %s134, %s137
      %p146 = scmp.eq.s32.totalorder %s19, 1
      %p147 = por %p145, %p146
      %p148 = scmp.ne.s32.totalorder %s137, %s138
      %p149 = scmp.eq.s32.totalorder %s19, 0
      %p150 = por %p148, %p149
      %p151 = scmp.ne.s32.totalorder %s137, %s138
      %p152 = scmp.eq.s32.totalorder %s20, 1
      %p153 = por %p151, %p152
      %p155 = scmp.ne.s32.totalorder %s138, %s154
      %p156 = scmp.eq.s32.totalorder %s20, 0
      %p157 = por %p155, %p156
      %p158 = scmp.le.s32.totalorder 1, %s14
      %p159 = scmp.lt.s32.totalorder %s14, 3
      %p160 = pnand %p158, %p159
      %p161 = pneg %p160
      // Predicated region
      $region9: #{model_forward.1} parent=5 // pred_check
        _
      $region10: #{model_forward.1} parent=5 // pred_check_branch
        %163 = sbr.rel (%p160) target = $region12
      $region11: #{model_forward.1} parent=5 // pred_region
        %s164 = ssub.s32 %s14, 1
        // Predicated region
        $region13: #{model_forward.1} parent=11 // pred_check
          %p165 = pneg %p61
        $region14: #{model_forward.1} parent=11 // pred_check_branch
          %167 = sbr.rel (%p165) target = $region16
        $region15: #{model_forward.1} parent=11 // pred_region
          _
        $region16: #{model_forward.1} parent=11 // pred_fallthru
          _
        // Predicated region
        $region17: #{model_forward.1} parent=11 // pred_check
          %p168 = pneg %p82
        $region18: #{model_forward.1} parent=11 // pred_check_branch
          %170 = sbr.rel (%p168) target = $region20
        $region19: #{model_forward.1} parent=11 // pred_region
          _
        $region20: #{model_forward.1} parent=11 // pred_fallthru
          _
        // Predicated region
        $region21: #{model_forward.1} parent=11 // pred_check
          %p171 = pneg %p103
        $region22: #{model_forward.1} parent=11 // pred_check_branch
          %173 = sbr.rel (%p171) target = $region24
        $region23: #{model_forward.1} parent=11 // pred_region
          _
        $region24: #{model_forward.1} parent=11 // pred_fallthru
          _
        // Predicated region
        $region25: #{model_forward.1} parent=11 // pred_check
          %p174 = pneg %p124
        $region26: #{model_forward.1} parent=11 // pred_check_branch
          %176 = sbr.rel (%p174) target = $region28
        $region27: #{model_forward.1} parent=11 // pred_region
          _
        $region28: #{model_forward.1} parent=11 // pred_fallthru
          _
      $region12: #{model_forward.1} parent=5 // pred_fallthru
        _
      %p177 = scmp.lt.s32.totalorder %s14, 2
      // Predicated region
      $region29: #{model_forward.1} parent=5 // pred_check
        %p178 = pneg %p177
      $region30: #{model_forward.1} parent=5 // pred_check_branch
        %180 = sbr.rel (%p178) target = $region32
      $region31: #{model_forward.1} parent=5 // pred_region
        // Predicated region
        $region33: #{model_forward.1} parent=31 // pred_check
          %p181 = pneg %p34
        $region34: #{model_forward.1} parent=31 // pred_check_branch
          %183 = sbr.rel (%p181) target = $region36
        $region35: #{model_forward.1} parent=31 // pred_region
          %p184 = scmp.lt.s32.totalorder %s14, 1
          %s185 = scalar_select %p184, %s14, 1
          %s186 = smul.addr %s185, 32
          %s187 = smul.addr %s186, 4
          %s188 = scalar_lea.vmem %s0, %s187
        $region36: #{model_forward.1} parent=31 // pred_fallthru
          _
      $region32: #{model_forward.1} parent=5 // pred_fallthru
        _
      %p189 = scmp.le.s32.totalorder 1, %s14
      %p190 = scmp.lt.s32.totalorder %s14, 3
      %p191 = pnand %p189, %p190
      %p192 = pneg %p191
      // Predicated region
      $region37: #{model_forward.1} parent=5 // pred_check
        _
      $region38: #{model_forward.1} parent=5 // pred_check_branch
        %194 = sbr.rel (%p191) target = $region40
      $region39: #{model_forward.1} parent=5 // pred_region
        %s195 = ssub.s32 %s14, 1
        %p196 = scmp.lt.s32.totalorder %s19, 1
        %s197 = scalar_select %p196, %s19, 1
        %s198 = smul.addr %s197, 32
        %s199 = smul.addr %s198, 4
        %s200 = scalar_lea.vmem %s0, %s199
        %p201 = pneg %p40
        %p202 = pneg %p37
        %p203 = pneg %p61
        %p204 = pneg %p58
        %p205 = pneg %p82
        %p206 = pneg %p79
        %p207 = pneg %p103
        %p208 = pneg %p100
        %p209 = pneg %p124
        %p210 = pneg %p121
        %p211 = pneg %p150
        %p212 = pneg %p147
        %s213 = sand.u32 %s137, 1
        %s214 = scalar_lea.sflag [#allocation3], %s213
        %s215 = sand.u32 %s137, 1
        %s216 = scalar_lea.vmem [#allocation2], %s215
        %p217 = scmp.lt.s32.totalorder %s19, 1
        %s218 = scalar_select %p217, %s19, 1
        %s219 = smul.addr %s218, 32
        %s220 = smul.addr %s219, 4
        %s221 = scalar_lea.vmem %s0, %s220
        %v223 = vld [vmem:[%s221] sm:$0xf]
        %v224 = vld [vmem:[%s221 + $0x4] sm:$0xf]
        %v225 = vld [vmem:[%s221 + $0x8] sm:$0xf]
        %v226 = vld [vmem:[%s221 + $0xc] sm:$0xf]
        %v227 = vld [vmem:[%s221 + $0x10] sm:$0xf]
        %v228 = vld [vmem:[%s221 + $0x14] sm:$0xf]
        %v229 = vld [vmem:[%s221 + $0x18] sm:$0xf]
        %v230 = vld [vmem:[%s221 + $0x1c] sm:$0xf]
        %v231 = vld [vmem:[%s1] sm:$0xf]
        %v232 = vld [vmem:[%s1 + $0x4] sm:$0xf]
        %v233 = vld [vmem:[%s1 + $0x8] sm:$0xf]
        %v234 = vld [vmem:[%s1 + $0xc] sm:$0xf]
        %v235 = vld [vmem:[%s2] sm:$0x1]
        %v237 = vlaneseq
        %v238 = vshrl.u32 %v237, 7
        %v239 = vsub.s32 0, %v238
        %v240 = vrot.slane %v235, %v239
        %v250 = vunpack.c.l.b16 %v223
        %v251 = vunpack.c.l.b16 %v224
        %v252 = vunpack.c.l.b16 %v225
        %v253 = vunpack.c.l.b16 %v226
        %v254 = vunpack.c.l.b16 %v227
        %v255 = vunpack.c.l.b16 %v228
        %v256 = vunpack.c.l.b16 %v229
        %v257 = vunpack.c.l.b16 %v230
        %v258 = vpack.c.b16 %v251, %v250
        %v259 = vpack.c.b16 %v253, %v252
        %v260 = vpack.c.b16 %v255, %v254
        %v261 = vpack.c.b16 %v257, %v256
        %v266 = vunpack.c.l.b16 %v231
        %v267 = vunpack.c.l.b16 %v232
        %v268 = vunpack.c.l.b16 %v233
        %v269 = vunpack.c.l.b16 %v234
        %v270 = vpack.c.b16 %v267, %v266
        %v271 = vpack.c.b16 %v269, %v268
        %vm274 = vcmask 261120
        %v276 = vsel %vm274, %v258, 0
        %v279 = vsel %vm274, %v259, 0
        %v282 = vsel %vm274, %v260, 0
        %v285 = vsel %vm274, %v261, 0
        %287 = vmatprep.subr.bf16.mxu0 0
        %288 = vmatpush1.bf16.msra.mxu0 %v270
        %289 = vmatprep.subr.bf16.mxu0 0
        %290 = vmatpush1.bf16.msra.mxu0 %v271
        %291 = vmatprep.subr.bf16.mxu0 0
        %292 = vmatpush1.bf16.msra.mxu0 0
        %293 = vmatprep.subr.bf16.mxu0 0
        %294 = vmatpush1.bf16.msra.mxu0 0
        %295 = vmatprep.subr.bf16.mxu0 0
        %296 = vmatpush1.bf16.msra.mxu0 0
        %297 = vmatprep.subr.bf16.mxu0 0
        %298 = vmatpush1.bf16.msra.mxu0 0
        %299 = vmatprep.subr.bf16.mxu0 0
        %300 = vmatpush1.bf16.msra.mxu0 0
        %301 = vmatprep.subr.bf16.mxu0 0
        %302 = vmatpush1.bf16.msra.mxu0 0
        %303 = vmatprep.subr.bf16.mxu0 0
        %304 = vmatpush1.bf16.msra.mxu0 0
        %305 = vmatprep.subr.bf16.mxu0 0
        %306 = vmatpush1.bf16.msra.mxu0 0
        %307 = vmatprep.subr.bf16.mxu0 0
        %308 = vmatpush1.bf16.msra.mxu0 0
        %309 = vmatprep.subr.bf16.mxu0 0
        %310 = vmatpush1.bf16.msra.mxu0 0
        %311 = vmatprep.subr.bf16.mxu0 0
        %312 = vmatpush1.bf16.msra.mxu0 0
        %313 = vmatprep.subr.bf16.mxu0 0
        %314 = vmatpush1.bf16.msra.mxu0 0
        %315 = vmatprep.subr.bf16.mxu0 0
        %316 = vmatpush1.bf16.msra.mxu0 0
        %317 = vmatprep.subr.bf16.mxu0 0
        %318 = vmatpush1.bf16.msra.mxu0 0
        %319 = vmatprep.mubr.bf16.mxu0 0
        %320 = vmatmul.mubr.bf16.gmra.mrb[0].mxu0 %v276
        %v321 = vpop.f32.mrb[0].mxu0
        %v322 = vadd.f32 %v240, %v321
        %v323 = vpop.f32.mrb[0].mxu0
        %v324 = vpop.f32.mrb[0].mxu0
        %v325 = vadd.f32 %v240, %v324
        %v326 = vpop.f32.mrb[0].mxu0
        %327 = vmatprep.mubr.bf16.mxu0 0
        %328 = vmatmul.mubr.bf16.gmra.mrb[0].mxu0 %v279
        %v329 = vpop.f32.mrb[0].mxu0
        %v330 = vadd.f32 %v240, %v329
        %v331 = vpop.f32.mrb[0].mxu0
        %v332 = vpop.f32.mrb[0].mxu0
        %v333 = vadd.f32 %v240, %v332
        %v334 = vpop.f32.mrb[0].mxu0
        %335 = vmatprep.mubr.bf16.mxu0 0
        %336 = vmatmul.mubr.bf16.gmra.mrb[0].mxu0 %v282
        %v337 = vpop.f32.mrb[0].mxu0
        %v338 = vadd.f32 %v240, %v337
        %v339 = vpop.f32.mrb[0].mxu0
        %v340 = vpop.f32.mrb[0].mxu0
        %v341 = vadd.f32 %v240, %v340
        %v342 = vpop.f32.mrb[0].mxu0
        %343 = vmatprep.mubr.bf16.mxu0 0
        %344 = vmatmul.mubr.bf16.gmra.mrb[0].mxu0 %v285
        %v345 = vpop.f32.mrb[0].mxu0
        %v346 = vadd.f32 %v240, %v345
        %v347 = vpop.f32.mrb[0].mxu0
        %v348 = vpop.f32.mrb[0].mxu0
        %v349 = vadd.f32 %v240, %v348
        %v350 = vpop.f32.mrb[0].mxu0
        %351 = vdwg.mxu0
        %v352 = vxor.u32 %v322, 2147483648
        %v353 = vxor.u32 %v325, 2147483648
        %v354 = vxor.u32 %v330, 2147483648
        %v355 = vxor.u32 %v333, 2147483648
        %v356 = vxor.u32 %v338, 2147483648
        %v357 = vxor.u32 %v341, 2147483648
        %v358 = vxor.u32 %v346, 2147483648
        %v359 = vxor.u32 %v349, 2147483648
        %v360 = vmul.f32 %v352, 1.442695
        %v361 = vpow.pop %v360
        %v362 = vmul.f32 %v353, 1.442695
        %v363 = vpow.pop %v362
        %v364 = vmul.f32 %v354, 1.442695
        %v365 = vpow.pop %v364
        %v366 = vmul.f32 %v355, 1.442695
        %v367 = vpow.pop %v366
        %v368 = vmul.f32 %v356, 1.442695
        %v369 = vpow.pop %v368
        %v370 = vmul.f32 %v357, 1.442695
        %v371 = vpow.pop %v370
        %v372 = vmul.f32 %v358, 1.442695
        %v373 = vpow.pop %v372
        %v374 = vmul.f32 %v359, 1.442695
        %v375 = vpow.pop %v374
        %v376 = vadd.f32 %v361, 1.0
        %v377 = vadd.f32 %v363, 1.0
        %v378 = vadd.f32 %v365, 1.0
        %v379 = vadd.f32 %v367, 1.0
        %v380 = vadd.f32 %v369, 1.0
        %v381 = vadd.f32 %v371, 1.0
        %v382 = vadd.f32 %v373, 1.0
        %v383 = vadd.f32 %v375, 1.0
        %v384 = vrcp.pop %v376
        %v385 = vmul.f32 1.0, %v384
        %v386 = vrcp.pop %v377
        %v387 = vmul.f32 1.0, %v386
        %v388 = vrcp.pop %v378
        %v389 = vmul.f32 1.0, %v388
        %v390 = vrcp.pop %v379
        %v391 = vmul.f32 1.0, %v390
        %v392 = vrcp.pop %v380
        %v393 = vmul.f32 1.0, %v392
        %v394 = vrcp.pop %v381
        %v395 = vmul.f32 1.0, %v394
        %v396 = vrcp.pop %v382
        %v397 = vmul.f32 1.0, %v396
        %v398 = vrcp.pop %v383
        %v399 = vmul.f32 1.0, %v398
        %v400 = vmul.f32 %v322, %v385
        %v401 = vmul.f32 %v325, %v387
        %v402 = vmul.f32 %v330, %v389
        %v403 = vmul.f32 %v333, %v391
        %v404 = vmul.f32 %v338, %v393
        %v405 = vmul.f32 %v341, %v395
        %v406 = vmul.f32 %v346, %v397
        %v407 = vmul.f32 %v349, %v399
        %v408 = vadd.f32 %v400, %v401
        %v409 = vadd.f32 %v408, %v402
        %v410 = vadd.f32 %v409, %v403
        %v411 = vadd.f32 %v410, %v404
        %v412 = vadd.f32 %v411, %v405
        %v413 = vadd.f32 %v412, %v406
        %v414 = vadd.f32 %v413, %v407
        %v415 = vrot.slane %v414, 4
        %v416 = vadd.f32 %v414, %v415
        %v417 = vrot.slane %v416, 2
        %v418 = vadd.f32 %v416, %v417
        %v419 = vrot.slane %v418, 1
        %v420 = vadd.f32 %v418, %v419
        %v421 = vadd.f32 %v420, 0.0
        %s422 = scalar_lea.vmem %s221, 32
        %v423 = vld [vmem:[%s422] sm:$0xf]
        %v424 = vld [vmem:[%s422 + $0x4] sm:$0xf]
        %v425 = vld [vmem:[%s422 + $0x8] sm:$0xf]
        %v426 = vld [vmem:[%s422 + $0xc] sm:$0xf]
        %v427 = vld [vmem:[%s422 + $0x10] sm:$0xf]
        %v428 = vld [vmem:[%s422 + $0x14] sm:$0xf]
        %v429 = vld [vmem:[%s422 + $0x18] sm:$0xf]
        %v430 = vld [vmem:[%s422 + $0x1c] sm:$0xf]
        %v439 = vunpack.c.l.b16 %v423
        %v440 = vunpack.c.l.b16 %v424
        %v441 = vunpack.c.l.b16 %v425
        %v442 = vunpack.c.l.b16 %v426
        %v443 = vunpack.c.l.b16 %v427
        %v444 = vunpack.c.l.b16 %v428
        %v445 = vunpack.c.l.b16 %v429
        %v446 = vunpack.c.l.b16 %v430
        %v447 = vpack.c.b16 %v440, %v439
        %v448 = vpack.c.b16 %v442, %v441
        %v449 = vpack.c.b16 %v444, %v443
        %v450 = vpack.c.b16 %v446, %v445
        %v452 = vsel %vm274, %v447, 0
        %v455 = vsel %vm274, %v448, 0
        %v458 = vsel %vm274, %v449, 0
        %v461 = vsel %vm274, %v450, 0
        %463 = vmatprep.subr.bf16.mxu0 0
        %464 = vmatpush1.bf16.msra.mxu0 %v270
        %465 = vmatprep.subr.bf16.mxu0 0
        %466 = vmatpush1.bf16.msra.mxu0 %v271
        %467 = vmatprep.subr.bf16.mxu0 0
        %468 = vmatpush1.bf16.msra.mxu0 0
        %469 = vmatprep.subr.bf16.mxu0 0
        %470 = vmatpush1.bf16.msra.mxu0 0
        %471 = vmatprep.subr.bf16.mxu0 0
        %472 = vmatpush1.bf16.msra.mxu0 0
        %473 = vmatprep.subr.bf16.mxu0 0
        %474 = vmatpush1.bf16.msra.mxu0 0
        %475 = vmatprep.subr.bf16.mxu0 0
        %476 = vmatpush1.bf16.msra.mxu0 0
        %477 = vmatprep.subr.bf16.mxu0 0
        %478 = vmatpush1.bf16.msra.mxu0 0
        %479 = vmatprep.subr.bf16.mxu0 0
        %480 = vmatpush1.bf16.msra.mxu0 0
        %481 = vmatprep.subr.bf16.mxu0 0
        %482 = vmatpush1.bf16.msra.mxu0 0
        %483 = vmatprep.subr.bf16.mxu0 0
        %484 = vmatpush1.bf16.msra.mxu0 0
        %485 = vmatprep.subr.bf16.mxu0 0
        %486 = vmatpush1.bf16.msra.mxu0 0
        %487 = vmatprep.subr.bf16.mxu0 0
        %488 = vmatpush1.bf16.msra.mxu0 0
        %489 = vmatprep.subr.bf16.mxu0 0
        %490 = vmatpush1.bf16.msra.mxu0 0
        %491 = vmatprep.subr.bf16.mxu0 0
        %492 = vmatpush1.bf16.msra.mxu0 0
        %493 = vmatprep.subr.bf16.mxu0 0
        %494 = vmatpush1.bf16.msra.mxu0 0
        %495 = vmatprep.mubr.bf16.mxu0 0
        %496 = vmatmul.mubr.bf16.gmra.mrb[0].mxu0 %v452
        %v497 = vpop.f32.mrb[0].mxu0
        %v498 = vadd.f32 %v240, %v497
        %v499 = vpop.f32.mrb[0].mxu0
        %v500 = vpop.f32.mrb[0].mxu0
        %v501 = vadd.f32 %v240, %v500
        %v502 = vpop.f32.mrb[0].mxu0
        %503 = vmatprep.mubr.bf16.mxu0 0
        %504 = vmatmul.mubr.bf16.gmra.mrb[0].mxu0 %v455
        %v505 = vpop.f32.mrb[0].mxu0
        %v506 = vadd.f32 %v240, %v505
        %v507 = vpop.f32.mrb[0].mxu0
        %v508 = vpop.f32.mrb[0].mxu0
        %v509 = vadd.f32 %v240, %v508
        %v510 = vpop.f32.mrb[0].mxu0
        %511 = vmatprep.mubr.bf16.mxu0 0
        %512 = vmatmul.mubr.bf16.gmra.mrb[0].mxu0 %v458
        %v513 = vpop.f32.mrb[0].mxu0
        %v514 = vadd.f32 %v240, %v513
        %v515 = vpop.f32.mrb[0].mxu0
        %v516 = vpop.f32.mrb[0].mxu0
        %v517 = vadd.f32 %v240, %v516
        %v518 = vpop.f32.mrb[0].mxu0
        %519 = vmatprep.mubr.bf16.mxu0 0
        %520 = vmatmul.mubr.bf16.gmra.mrb[0].mxu0 %v461
        %v521 = vpop.f32.mrb[0].mxu0
        %v522 = vadd.f32 %v240, %v521
        %v523 = vpop.f32.mrb[0].mxu0
        %v524 = vpop.f32.mrb[0].mxu0
        %v525 = vadd.f32 %v240, %v524
        %v526 = vpop.f32.mrb[0].mxu0
        %527 = vdwg.mxu0
        %v528 = vxor.u32 %v498, 2147483648
        %v529 = vxor.u32 %v501, 2147483648
        %v530 = vxor.u32 %v506, 2147483648
        %v531 = vxor.u32 %v509, 2147483648
        %v532 = vxor.u32 %v514, 2147483648
        %v533 = vxor.u32 %v517, 2147483648
        %v534 = vxor.u32 %v522, 2147483648
        %v535 = vxor.u32 %v525, 2147483648
        %v536 = vmul.f32 %v528, 1.442695
        %v537 = vpow.pop %v536
        %v538 = vmul.f32 %v529, 1.442695
        %v539 = vpow.pop %v538
        %v540 = vmul.f32 %v530, 1.442695
        %v541 = vpow.pop %v540
        %v542 = vmul.f32 %v531, 1.442695
        %v543 = vpow.pop %v542
        %v544 = vmul.f32 %v532, 1.442695
        %v545 = vpow.pop %v544
        %v546 = vmul.f32 %v533, 1.442695
        %v547 = vpow.pop %v546
        %v548 = vmul.f32 %v534, 1.442695
        %v549 = vpow.pop %v548
        %v550 = vmul.f32 %v535, 1.442695
        %v551 = vpow.pop %v550
        %v552 = vadd.f32 %v537, 1.0
        %v553 = vadd.f32 %v539, 1.0
        %v554 = vadd.f32 %v541, 1.0
        %v555 = vadd.f32 %v543, 1.0
        %v556 = vadd.f32 %v545, 1.0
        %v557 = vadd.f32 %v547, 1.0
        %v558 = vadd.f32 %v549, 1.0
        %v559 = vadd.f32 %v551, 1.0
        %v560 = vrcp.pop %v552
        %v561 = vmul.f32 1.0, %v560
        %v562 = vrcp.pop %v553
        %v563 = vmul.f32 1.0, %v562
        %v564 = vrcp.pop %v554
        %v565 = vmul.f32 1.0, %v564
        %v566 = vrcp.pop %v555
        %v567 = vmul.f32 1.0, %v566
        %v568 = vrcp.pop %v556
        %v569 = vmul.f32 1.0, %v568
        %v570 = vrcp.pop %v557
        %v571 = vmul.f32 1.0, %v570
        %v572 = vrcp.pop %v558
        %v573 = vmul.f32 1.0, %v572
        %v574 = vrcp.pop %v559
        %v575 = vmul.f32 1.0, %v574
        %v576 = vmul.f32 %v498, %v561
        %v577 = vmul.f32 %v501, %v563
        %v578 = vmul.f32 %v506, %v565
        %v579 = vmul.f32 %v509, %v567
        %v580 = vmul.f32 %v514, %v569
        %v581 = vmul.f32 %v517, %v571
        %v582 = vmul.f32 %v522, %v573
        %v583 = vmul.f32 %v525, %v575
        %v584 = vadd.f32 %v576, %v577
        %v585 = vadd.f32 %v584, %v578
        %v586 = vadd.f32 %v585, %v579
        %v587 = vadd.f32 %v586, %v580
        %v588 = vadd.f32 %v587, %v581
        %v589 = vadd.f32 %v588, %v582
        %v590 = vadd.f32 %v589, %v583
        %v591 = vrot.slane %v590, 4
        %v592 = vadd.f32 %v590, %v591
        %v593 = vrot.slane %v592, 2
        %v594 = vadd.f32 %v592, %v593
        %v595 = vrot.slane %v594, 1
        %v596 = vadd.f32 %v594, %v595
        %v597 = vadd.f32 %v421, %v596
        %s598 = scalar_lea.vmem %s221, 64
        %v599 = vld [vmem:[%s598] sm:$0xf]
        %v600 = vld [vmem:[%s598 + $0x4] sm:$0xf]
        %v601 = vld [vmem:[%s598 + $0x8] sm:$0xf]
        %v602 = vld [vmem:[%s598 + $0xc] sm:$0xf]
        %v603 = vld [vmem:[%s598 + $0x10] sm:$0xf]
        %v604 = vld [vmem:[%s598 + $0x14] sm:$0xf]
        %v605 = vld [vmem:[%s598 + $0x18] sm:$0xf]
        %v606 = vld [vmem:[%s598 + $0x1c] sm:$0xf]
        %v615 = vunpack.c.l.b16 %v599
        %v616 = vunpack.c.l.b16 %v600
        %v617 = vunpack.c.l.b16 %v601
        %v618 = vunpack.c.l.b16 %v602
        %v619 = vunpack.c.l.b16 %v603
        %v620 = vunpack.c.l.b16 %v604
        %v621 = vunpack.c.l.b16 %v605
        %v622 = vunpack.c.l.b16 %v606
        %v623 = vpack.c.b16 %v616, %v615
        %v624 = vpack.c.b16 %v618, %v617
        %v625 = vpack.c.b16 %v620, %v619
        %v626 = vpack.c.b16 %v622, %v621
        %v628 = vsel %vm274, %v623, 0
        %v631 = vsel %vm274, %v624, 0
        %v634 = vsel %vm274, %v625, 0
        %v637 = vsel %vm274, %v626, 0
        %639 = vmatprep.subr.bf16.mxu0 0
        %640 = vmatpush1.bf16.msra.mxu0 %v270
        %641 = vmatprep.subr.bf16.mxu0 0
        %642 = vmatpush1.bf16.msra.mxu0 %v271
        %643 = vmatprep.subr.bf16.mxu0 0
        %644 = vmatpush1.bf16.msra.mxu0 0
        %645 = vmatprep.subr.bf16.mxu0 0
        %646 = vmatpush1.bf16.msra.mxu0 0
        %647 = vmatprep.subr.bf16.mxu0 0
        %648 = vmatpush1.bf16.msra.mxu0 0
        %649 = vmatprep.subr.bf16.mxu0 0
        %650 = vmatpush1.bf16.msra.mxu0 0
        %651 = vmatprep.subr.bf16.mxu0 0
        %652 = vmatpush1.bf16.msra.mxu0 0
        %653 = vmatprep.subr.bf16.mxu0 0
        %654 = vmatpush1.bf16.msra.mxu0 0
        %655 = vmatprep.subr.bf16.mxu0 0
        %656 = vmatpush1.bf16.msra.mxu0 0
        %657 = vmatprep.subr.bf16.mxu0 0
        %658 = vmatpush1.bf16.msra.mxu0 0
        %659 = vmatprep.subr.bf16.mxu0 0
        %660 = vmatpush1.bf16.msra.mxu0 0
        %661 = vmatprep.subr.bf16.mxu0 0
        %662 = vmatpush1.bf16.msra.mxu0 0
        %663 = vmatprep.subr.bf16.mxu0 0
        %664 = vmatpush1.bf16.msra.mxu0 0
        %665 = vmatprep.subr.bf16.mxu0 0
        %666 = vmatpush1.bf16.msra.mxu0 0
        %667 = vmatprep.subr.bf16.mxu0 0
        %668 = vmatpush1.bf16.msra.mxu0 0
        %669 = vmatprep.subr.bf16.mxu0 0
        %670 = vmatpush1.bf16.msra.mxu0 0
        %671 = vmatprep.mubr.bf16.mxu0 0
        %672 = vmatmul.mubr.bf16.gmra.mrb[0].mxu0 %v628
        %v673 = vpop.f32.mrb[0].mxu0
        %v674 = vadd.f32 %v240, %v673
        %v675 = vpop.f32.mrb[0].mxu0
        %v676 = vpop.f32.mrb[0].mxu0
        %v677 = vadd.f32 %v240, %v676
        %v678 = vpop.f32.mrb[0].mxu0
        %679 = vmatprep.mubr.bf16.mxu0 0
        %680 = vmatmul.mubr.bf16.gmra.mrb[0].mxu0 %v631
        %v681 = vpop.f32.mrb[0].mxu0
        %v682 = vadd.f32 %v240, %v681
        %v683 = vpop.f32.mrb[0].mxu0
        %v684 = vpop.f32.mrb[0].mxu0
        %v685 = vadd.f32 %v240, %v684
        %v686 = vpop.f32.mrb[0].mxu0
        %687 = vmatprep.mubr.bf16.mxu0 0
        %688 = vmatmul.mubr.bf16.gmra.mrb[0].mxu0 %v634
        %v689 = vpop.f32.mrb[0].mxu0
        %v690 = vadd.f32 %v240, %v689
        %v691 = vpop.f32.mrb[0].mxu0
        %v692 = vpop.f32.mrb[0].mxu0
        %v693 = vadd.f32 %v240, %v692
        %v694 = vpop.f32.mrb[0].mxu0
        %695 = vmatprep.mubr.bf16.mxu0 0
        %696 = vmatmul.mubr.bf16.gmra.mrb[0].mxu0 %v637
        %v697 = vpop.f32.mrb[0].mxu0
        %v698 = vadd.f32 %v240, %v697
        %v699 = vpop.f32.mrb[0].mxu0
        %v700 = vpop.f32.mrb[0].mxu0
        %v701 = vadd.f32 %v240, %v700
        %v702 = vpop.f32.mrb[0].mxu0
        %703 = vdwg.mxu0
        %v704 = vxor.u32 %v674, 2147483648
        %v705 = vxor.u32 %v677, 2147483648
        %v706 = vxor.u32 %v682, 2147483648
        %v707 = vxor.u32 %v685, 2147483648
        %v708 = vxor.u32 %v690, 2147483648
        %v709 = vxor.u32 %v693, 2147483648
        %v710 = vxor.u32 %v698, 2147483648
        %v711 = vxor.u32 %v701, 2147483648
        %v712 = vmul.f32 %v704, 1.442695
        %v713 = vpow.pop %v712
        %v714 = vmul.f32 %v705, 1.442695
        %v715 = vpow.pop %v714
        %v716 = vmul.f32 %v706, 1.442695
        %v717 = vpow.pop %v716
        %v718 = vmul.f32 %v707, 1.442695
        %v719 = vpow.pop %v718
        %v720 = vmul.f32 %v708, 1.442695
        %v721 = vpow.pop %v720
        %v722 = vmul.f32 %v709, 1.442695
        %v723 = vpow.pop %v722
        %v724 = vmul.f32 %v710, 1.442695
        %v725 = vpow.pop %v724
        %v726 = vmul.f32 %v711, 1.442695
        %v727 = vpow.pop %v726
        %v728 = vadd.f32 %v713, 1.0
        %v729 = vadd.f32 %v715, 1.0
        %v730 = vadd.f32 %v717, 1.0
        %v731 = vadd.f32 %v719, 1.0
        %v732 = vadd.f32 %v721, 1.0
        %v733 = vadd.f32 %v723, 1.0
        %v734 = vadd.f32 %v725, 1.0
        %v735 = vadd.f32 %v727, 1.0
        %v736 = vrcp.pop %v728
        %v737 = vmul.f32 1.0, %v736
        %v738 = vrcp.pop %v729
        %v739 = vmul.f32 1.0, %v738
        %v740 = vrcp.pop %v730
        %v741 = vmul.f32 1.0, %v740
        %v742 = vrcp.pop %v731
        %v743 = vmul.f32 1.0, %v742
        %v744 = vrcp.pop %v732
        %v745 = vmul.f32 1.0, %v744
        %v746 = vrcp.pop %v733
        %v747 = vmul.f32 1.0, %v746
        %v748 = vrcp.pop %v734
        %v749 = vmul.f32 1.0, %v748
        %v750 = vrcp.pop %v735
        %v751 = vmul.f32 1.0, %v750
        %v752 = vmul.f32 %v674, %v737
        %v753 = vmul.f32 %v677, %v739
        %v754 = vmul.f32 %v682, %v741
        %v755 = vmul.f32 %v685, %v743
        %v756 = vmul.f32 %v690, %v745
        %v757 = vmul.f32 %v693, %v747
        %v758 = vmul.f32 %v698, %v749
        %v759 = vmul.f32 %v701, %v751
        %v760 = vadd.f32 %v752, %v753
        %v761 = vadd.f32 %v760, %v754
        %v762 = vadd.f32 %v761, %v755
        %v763 = vadd.f32 %v762, %v756
        %v764 = vadd.f32 %v763, %v757
        %v765 = vadd.f32 %v764, %v758
        %v766 = vadd.f32 %v765, %v759
        %v767 = vrot.slane %v766, 4
        %v768 = vadd.f32 %v766, %v767
        %v769 = vrot.slane %v768, 2
        %v770 = vadd.f32 %v768, %v769
        %v771 = vrot.slane %v770, 1
        %v772 = vadd.f32 %v770, %v771
        %v773 = vadd.f32 %v597, %v772
        %s774 = scalar_lea.vmem %s221, 96
        %v775 = vld [vmem:[%s774] sm:$0xf]
        %v776 = vld [vmem:[%s774 + $0x4] sm:$0xf]
        %v777 = vld [vmem:[%s774 + $0x8] sm:$0xf]
        %v778 = vld [vmem:[%s774 + $0xc] sm:$0xf]
        %v779 = vld [vmem:[%s774 + $0x10] sm:$0xf]
        %v780 = vld [vmem:[%s774 + $0x14] sm:$0xf]
        %v781 = vld [vmem:[%s774 + $0x18] sm:$0xf]
        %v782 = vld [vmem:[%s774 + $0x1c] sm:$0xf]
        %v791 = vunpack.c.l.b16 %v775
        %v792 = vunpack.c.l.b16 %v776
        %v793 = vunpack.c.l.b16 %v777
        %v794 = vunpack.c.l.b16 %v778
        %v795 = vunpack.c.l.b16 %v779
        %v796 = vunpack.c.l.b16 %v780
        %v797 = vunpack.c.l.b16 %v781
        %v798 = vunpack.c.l.b16 %v782
        %v799 = vpack.c.b16 %v792, %v791
        %v800 = vpack.c.b16 %v794, %v793
        %v801 = vpack.c.b16 %v796, %v795
        %v802 = vpack.c.b16 %v798, %v797
        %v804 = vsel %vm274, %v799, 0
        %v807 = vsel %vm274, %v800, 0
        %v810 = vsel %vm274, %v801, 0
        %v813 = vsel %vm274, %v802, 0
        %815 = vmatprep.subr.bf16.mxu0 0
        %816 = vmatpush1.bf16.msra.mxu0 %v270
        %817 = vmatprep.subr.bf16.mxu0 0
        %818 = vmatpush1.bf16.msra.mxu0 %v271
        %819 = vmatprep.subr.bf16.mxu0 0
        %820 = vmatpush1.bf16.msra.mxu0 0
        %821 = vmatprep.subr.bf16.mxu0 0
        %822 = vmatpush1.bf16.msra.mxu0 0
        %823 = vmatprep.subr.bf16.mxu0 0
        %824 = vmatpush1.bf16.msra.mxu0 0
        %825 = vmatprep.subr.bf16.mxu0 0
        %826 = vmatpush1.bf16.msra.mxu0 0
        %827 = vmatprep.subr.bf16.mxu0 0
        %828 = vmatpush1.bf16.msra.mxu0 0
        %829 = vmatprep.subr.bf16.mxu0 0
        %830 = vmatpush1.bf16.msra.mxu0 0
        %831 = vmatprep.subr.bf16.mxu0 0
        %832 = vmatpush1.bf16.msra.mxu0 0
        %833 = vmatprep.subr.bf16.mxu0 0
        %834 = vmatpush1.bf16.msra.mxu0 0
        %835 = vmatprep.subr.bf16.mxu0 0
        %836 = vmatpush1.bf16.msra.mxu0 0
        %837 = vmatprep.subr.bf16.mxu0 0
        %838 = vmatpush1.bf16.msra.mxu0 0
        %839 = vmatprep.subr.bf16.mxu0 0
        %840 = vmatpush1.bf16.msra.mxu0 0
        %841 = vmatprep.subr.bf16.mxu0 0
        %842 = vmatpush1.bf16.msra.mxu0 0
        %843 = vmatprep.subr.bf16.mxu0 0
        %844 = vmatpush1.bf16.msra.mxu0 0
        %845 = vmatprep.subr.bf16.mxu0 0
        %846 = vmatpush1.bf16.msra.mxu0 0
        %847 = vmatprep.mubr.bf16.mxu0 0
        %848 = vmatmul.mubr.bf16.gmra.mrb[0].mxu0 %v804
        %v849 = vpop.f32.mrb[0].mxu0
        %v850 = vadd.f32 %v240, %v849
        %v851 = vpop.f32.mrb[0].mxu0
        %v852 = vpop.f32.mrb[0].mxu0
        %v853 = vadd.f32 %v240, %v852
        %v854 = vpop.f32.mrb[0].mxu0
        %855 = vmatprep.mubr.bf16.mxu0 0
        %856 = vmatmul.mubr.bf16.gmra.mrb[0].mxu0 %v807
        %v857 = vpop.f32.mrb[0].mxu0
        %v858 = vadd.f32 %v240, %v857
        %v859 = vpop.f32.mrb[0].mxu0
        %v860 = vpop.f32.mrb[0].mxu0
        %v861 = vadd.f32 %v240, %v860
        %v862 = vpop.f32.mrb[0].mxu0
        %863 = vmatprep.mubr.bf16.mxu0 0
        %864 = vmatmul.mubr.bf16.gmra.mrb[0].mxu0 %v810
        %v865 = vpop.f32.mrb[0].mxu0
        %v866 = vadd.f32 %v240, %v865
        %v867 = vpop.f32.mrb[0].mxu0
        %v868 = vpop.f32.mrb[0].mxu0
        %v869 = vadd.f32 %v240, %v868
        %v870 = vpop.f32.mrb[0].mxu0
        %871 = vmatprep.mubr.bf16.mxu0 0
        %872 = vmatmul.mubr.bf16.gmra.mrb[0].mxu0 %v813
        %v873 = vpop.f32.mrb[0].mxu0
        %v874 = vadd.f32 %v240, %v873
        %v875 = vpop.f32.mrb[0].mxu0
        %v876 = vpop.f32.mrb[0].mxu0
        %v877 = vadd.f32 %v240, %v876
        %v878 = vpop.f32.mrb[0].mxu0
        %879 = vdwg.mxu0
        %v880 = vxor.u32 %v850, 2147483648
        %v881 = vxor.u32 %v853, 2147483648
        %v882 = vxor.u32 %v858, 2147483648
        %v883 = vxor.u32 %v861, 2147483648
        %v884 = vxor.u32 %v866, 2147483648
        %v885 = vxor.u32 %v869, 2147483648
        %v886 = vxor.u32 %v874, 2147483648
        %v887 = vxor.u32 %v877, 2147483648
        %v888 = vmul.f32 %v880, 1.442695
        %v889 = vpow.pop %v888
        %v890 = vmul.f32 %v881, 1.442695
        %v891 = vpow.pop %v890
        %v892 = vmul.f32 %v882, 1.442695
        %v893 = vpow.pop %v892
        %v894 = vmul.f32 %v883, 1.442695
        %v895 = vpow.pop %v894
        %v896 = vmul.f32 %v884, 1.442695
        %v897 = vpow.pop %v896
        %v898 = vmul.f32 %v885, 1.442695
        %v899 = vpow.pop %v898
        %v900 = vmul.f32 %v886, 1.442695
        %v901 = vpow.pop %v900
        %v902 = vmul.f32 %v887, 1.442695
        %v903 = vpow.pop %v902
        %v904 = vadd.f32 %v889, 1.0
        %v905 = vadd.f32 %v891, 1.0
        %v906 = vadd.f32 %v893, 1.0
        %v907 = vadd.f32 %v895, 1.0
        %v908 = vadd.f32 %v897, 1.0
        %v909 = vadd.f32 %v899, 1.0
        %v910 = vadd.f32 %v901, 1.0
        %v911 = vadd.f32 %v903, 1.0
        %v912 = vrcp.pop %v904
        %v913 = vmul.f32 1.0, %v912
        %v914 = vrcp.pop %v905
        %v915 = vmul.f32 1.0, %v914
        %v916 = vrcp.pop %v906
        %v917 = vmul.f32 1.0, %v916
        %v918 = vrcp.pop %v907
        %v919 = vmul.f32 1.0, %v918
        %v920 = vrcp.pop %v908
        %v921 = vmul.f32 1.0, %v920
        %v922 = vrcp.pop %v909
        %v923 = vmul.f32 1.0, %v922
        %v924 = vrcp.pop %v910
        %v925 = vmul.f32 1.0, %v924
        %v926 = vrcp.pop %v911
        %v927 = vmul.f32 1.0, %v926
        %v928 = vmul.f32 %v850, %v913
        %v929 = vmul.f32 %v853, %v915
        %v930 = vmul.f32 %v858, %v917
        %v931 = vmul.f32 %v861, %v919
        %v932 = vmul.f32 %v866, %v921
        %v933 = vmul.f32 %v869, %v923
        %v934 = vmul.f32 %v874, %v925
        %v935 = vmul.f32 %v877, %v927
        %v936 = vadd.f32 %v928, %v929
        %v937 = vadd.f32 %v936, %v930
        %v938 = vadd.f32 %v937, %v931
        %v939 = vadd.f32 %v938, %v932
        %v940 = vadd.f32 %v939, %v933
        %v941 = vadd.f32 %v940, %v934
        %v942 = vadd.f32 %v941, %v935
        %v943 = vrot.slane %v942, 4
        %v944 = vadd.f32 %v942, %v943
        %v945 = vrot.slane %v944, 2
        %v946 = vadd.f32 %v944, %v945
        %v947 = vrot.slane %v946, 1
        %v948 = vadd.f32 %v946, %v947
        %v949 = vadd.f32 %v773, %v948
        %v950 = vmul.f32 %v949, 0.00390625
        %v951 = vpack.c.bf16 %v950, %v950
        %v952 = vld [vmem:[%s3] sm:$0xf]
        %v953 = vld [vmem:[%s3 + $0x4] sm:$0xf]
        %v954 = vld [vmem:[%s3 + $0x8] sm:$0xf]
        %v955 = vld [vmem:[%s3 + $0xc] sm:$0xf]
        %v956 = vld [vmem:[%s3 + $0x10] sm:$0xf]
        %v957 = vld [vmem:[%s3 + $0x14] sm:$0xf]
        %v958 = vld [vmem:[%s3 + $0x18] sm:$0xf]
        %v959 = vld [vmem:[%s3 + $0x1c] sm:$0xf]
        %v960 = vld [vmem:[%s3 + $0x20] sm:$0xf]
        %v961 = vld [vmem:[%s3 + $0x24] sm:$0xf]
        %v962 = vld [vmem:[%s3 + $0x28] sm:$0xf]
        %v963 = vld [vmem:[%s3 + $0x2c] sm:$0xf]
        %v964 = vld [vmem:[%s3 + $0x30] sm:$0xf]
        %v965 = vld [vmem:[%s3 + $0x34] sm:$0xf]
        %v966 = vld [vmem:[%s3 + $0x38] sm:$0xf]
        %v967 = vld [vmem:[%s3 + $0x3c] sm:$0xf]
        %v968 = vld [vmem:[%s4] sm:$0x1]
        %v985 = vunpack.c.l.b16 %v952
        %v986 = vunpack.c.l.b16 %v953
        %v987 = vunpack.c.l.b16 %v954
        %v988 = vunpack.c.l.b16 %v955
        %v989 = vunpack.c.l.b16 %v956
        %v990 = vunpack.c.l.b16 %v957
        %v991 = vunpack.c.l.b16 %v958
        %v992 = vunpack.c.l.b16 %v959
        %v993 = vunpack.c.l.b16 %v960
        %v994 = vunpack.c.l.b16 %v961
        %v995 = vunpack.c.l.b16 %v962
        %v996 = vunpack.c.l.b16 %v963
        %v997 = vunpack.c.l.b16 %v964
        %v998 = vunpack.c.l.b16 %v965
        %v999 = vunpack.c.l.b16 %v966
        %v1000 = vunpack.c.l.b16 %v967
        %v1001 = vpack.c.b16 %v986, %v985
        %v1002 = vpack.c.b16 %v988, %v987
        %v1003 = vpack.c.b16 %v990, %v989
        %v1004 = vpack.c.b16 %v992, %v991
        %v1005 = vpack.c.b16 %v994, %v993
        %v1006 = vpack.c.b16 %v996, %v995
        %v1007 = vpack.c.b16 %v998, %v997
        %v1008 = vpack.c.b16 %v1000, %v999
        %1017 = vmatprep.subr.bf16.mxu0 0
        %1018 = vmatpush1.bf16.msra.mxu0 %v1001
        %1019 = vmatprep.subr.bf16.mxu0 0
        %1020 = vmatpush1.bf16.msra.mxu0 %v1002
        %1021 = vmatprep.subr.bf16.mxu0 0
        %1022 = vmatpush1.bf16.msra.mxu0 %v1003
        %1023 = vmatprep.subr.bf16.mxu0 0
        %1024 = vmatpush1.bf16.msra.mxu0 %v1004
        %1025 = vmatprep.subr.bf16.mxu0 0
        %1026 = vmatpush1.bf16.msra.mxu0 %v1005
        %1027 = vmatprep.subr.bf16.mxu0 0
        %1028 = vmatpush1.bf16.msra.mxu0 %v1006
        %1029 = vmatprep.subr.bf16.mxu0 0
        %1030 = vmatpush1.bf16.msra.mxu0 %v1007
        %1031 = vmatprep.subr.bf16.mxu0 0
        %1032 = vmatpush1.bf16.msra.mxu0 %v1008
        %1033 = vmatprep.subr.bf16.mxu0 0
        %1034 = vmatpush1.bf16.msra.mxu0 0
        %1035 = vmatprep.subr.bf16.mxu0 0
        %1036 = vmatpush1.bf16.msra.mxu0 0
        %1037 = vmatprep.subr.bf16.mxu0 0
        %1038 = vmatpush1.bf16.msra.mxu0 0
        %1039 = vmatprep.subr.bf16.mxu0 0
        %1040 = vmatpush1.bf16.msra.mxu0 0
        %1041 = vmatprep.subr.bf16.mxu0 0
        %1042 = vmatpush1.bf16.msra.mxu0 0
        %1043 = vmatprep.subr.bf16.mxu0 0
        %1044 = vmatpush1.bf16.msra.mxu0 0
        %1045 = vmatprep.subr.bf16.mxu0 0
        %1046 = vmatpush1.bf16.msra.mxu0 0
        %1047 = vmatprep.subr.bf16.mxu0 0
        %1048 = vmatpush1.bf16.msra.mxu0 0
        %1049 = vmatprep.mubr.bf16.mxu0 0
        %1050 = vmatmul.mubr.bf16.gmra.mrb[0].mxu0 %v951
        %v1051 = vpop.f32.mrb[0].mxu0
        %v1052 = vadd.f32 %v968, %v1051
        %v1053 = vpop.f32.mrb[0].mxu0
        %v1054 = vpop.f32.mrb[0].mxu0
        %v1055 = vpop.f32.mrb[0].mxu0
        %1056 = vdwg.mxu0
        %1057 = vst [vmem:[%s216] sm:$0x1] %v1052
        %s1058 = sand.u32 %s137, 1
        %s1059 = scalar_lea.sflag [#allocation3], %s1058
        %s1060 = sand.u32 %s137, 1
        %s1061 = scalar_lea.vmem [#allocation2], %s1060
        // Predicated region
        $region41: #{model_forward.1} parent=39 // pred_check
          %p1062 = pneg %p147
        $region42: #{model_forward.1} parent=39 // pred_check_branch
          %1064 = sbr.rel (%p1062) target = $region44
        $region43: #{model_forward.1} parent=39 // pred_region
          %s1066 = ssub.s32 16, 16
          %1067 = vsyncadd %s1059, %s1066
          %s1068 = smul.addr %s19, 16
          %s1069 = scalar_lea.hbm %s5, %s1068
          %s1071 = sshll.u32 %s1061, 4
          %s1072 = int_to_ptr.vmem [resolvable:$true] %s1071
          %1074 = dma.vmem_to_hbm [thread:$0]  %s1072, 16, %s1069, %s1059
        $region44: #{model_forward.1} parent=39 // pred_fallthru
          _
      $region40: #{model_forward.1} parent=5 // pred_fallthru
        _
      %p1075 = scmp.le.s32.totalorder 2, %s14
      // Predicated region
      $region45: #{model_forward.1} parent=5 // pred_check
        %p1076 = pneg %p1075
      $region46: #{model_forward.1} parent=5 // pred_check_branch
        %1078 = sbr.rel (%p1076) target = $region48
      $region47: #{model_forward.1} parent=5 // pred_region
        %s1079 = ssub.s32 %s14, 2
        // Predicated region
        $region49: #{model_forward.1} parent=47 // pred_check
          %p1080 = pneg %p153
        $region50: #{model_forward.1} parent=47 // pred_check_branch
          %1082 = sbr.rel (%p1080) target = $region52
        $region51: #{model_forward.1} parent=47 // pred_region
          %s1083 = sand.u32 %s138, 1
          %s1084 = scalar_lea.sflag [#allocation3], %s1083
          %s1085 = sand.u32 %s138, 1
          %s1086 = scalar_lea.vmem [#allocation2], %s1085
          %1087 = dma.done %s1084, 16
        $region52: #{model_forward.1} parent=47 // pred_fallthru
          _
      $region48: #{model_forward.1} parent=5 // pred_fallthru
        _
    $region6: #{model_forward.1} parent=1 // loop_footer
      %s18 = sadd.s32 1, %s14
    $region7: #{model_forward.1} parent=1 // loop_footer_branch
      %13 = sbr.rel target = $region3
    $region8: #{model_forward.1} parent=1 // loop_exit
      _
    %1088 = vsyncpa [#allocation3], 1
    %s1089 = scalar_lea.sflag [#allocation3], 1
    %1090 = vsyncpa %s1089, 1

</llo_original>
